<compile_context>
chip_gen: v7x
topology: tpu7x:2x2x1
jax: 0.10.0
libtpu: 0.0.40
codegen_flags: <defaults>
</compile_context>

<pallas_src>
import functools

import jax
import jax.numpy as jnp
from jax.experimental import pallas as pl
from jax.experimental.pallas import tpu as pltpu


def _value_net_kernel(x_ref, w1_ref, b1_ref, w2_ref, b2_ref, w3_ref, b3_ref, o_ref):
    """Fused 3-layer MLP for one batch tile; weights/biases are VMEM-resident."""
    cdt = w1_ref.dtype                          # MXU compute dtype (f32 or bf16)
    x = x_ref[...].astype(cdt)
    # Matmuls accumulate in f32 on the MXU; bias-add / ReLU epilogue stays in f32
    # (avoids bf16 VPU work, which v5e lacks).
    h = jnp.dot(x, w1_ref[...], preferred_element_type=jnp.float32) + b1_ref[...]
    h = jnp.maximum(h, 0.0)
    h = jnp.dot(h.astype(cdt), w2_ref[...], preferred_element_type=jnp.float32) + b2_ref[...]
    h = jnp.maximum(h, 0.0)
    out = jnp.dot(h.astype(cdt), w3_ref[...], preferred_element_type=jnp.float32) + b3_ref[...]
    o_ref[...] = out.astype(o_ref.dtype)


def _pick_block_b(B, max_block=512):
    """Batch tile: as large as possible, but keep >=2 grid steps once B is sizable
    (so a 'parallel' batch axis can shard across v7x's 2 TensorCores). Tiles that
    don't cover the full batch are a multiple of 8 rows (sublane granularity)."""
    if B <= 8:
        return B                                   # single block == full batch
    if B <= 2 * max_block:
        blk = -(-((B + 1) // 2) // 8) * 8          # ~half the batch, rounded up to 8
        return min(blk, B)
    return max_block


@functools.partial(jax.jit, static_argnames=("block_b", "compute_dtype"))
def value_network_forward(state, params, *, block_b=None, compute_dtype=None):
    """Runs the 3-layer value MLP on `state` of shape (B, input_dim)."""
    w1, b1, w2, b2, w3, b3 = (
        params["w1"], params["b1"], params["w2"],
        params["b2"], params["w3"], params["b3"],
    )
    B, in_dim = state.shape
    h1 = w1.shape[1]
    h2 = w2.shape[1]
    out_dim = w3.shape[1]

    if compute_dtype is None:
        compute_dtype = state.dtype
    compute_dtype = jnp.dtype(compute_dtype)
    out_dtype = state.dtype

    # Streamed input + weights in the compute dtype (bf16 halves HBM bytes and
    # doubles MXU rate on v6e/v7x); biases stay f32 for the f32 epilogue.
    state_c = state.astype(compute_dtype)
    w1c = w1.astype(compute_dtype)
    w2c = w2.astype(compute_dtype)
    w3c = w3.astype(compute_dtype)
    b1f = b1.astype(jnp.float32)
    b2f = b2.astype(jnp.float32)
    b3f = b3.astype(jnp.float32)

    # Lane-dense output slab: pad layer-3 to a multiple of 128 output columns so the
    # store path uses full-width stores instead of 1-lane masked partial stores.
    out_dim_p = pl.cdiv(out_dim, 128) * 128
    if out_dim_p != out_dim:
        w3c = jnp.pad(w3c, ((0, 0), (0, out_dim_p - out_dim)))
        b3f = jnp.pad(b3f, ((0, 0), (0, out_dim_p - out_dim)))

    if block_b is None:
        block_b = _pick_block_b(B)
    num_blocks = pl.cdiv(B, block_b)   # ragged last block handled by Pallas; no jnp.pad

    x_spec_kwargs = {}
    if num_blocks >= 3:
        # Deeper buffering only on the single streaming input; weights stay resident.
        x_spec_kwargs["pipeline_mode"] = pl.Buffered(3)

    # Rough VMEM footprint; raise the scoped limit only when the default would be tight.
    xb = compute_dtype.itemsize
    est = (block_b * in_dim * xb * 3                             # streamed x buffers
           + block_b * out_dim_p * 4 * 2                         # double-buffered output
           + (in_dim * h1 + h1 * h2 + h2 * out_dim_p) * xb * 2   # resident weights
           + (h1 + h2 + out_dim_p) * 4 * 2                       # resident biases
           + block_b * (h1 + h2 + out_dim_p) * 4)                # f32 intermediates
    vmem_limit = int(min(est * 1.5, 64 * 1024 * 1024)) if est > 24 * 1024 * 1024 else None

    out = pl.pallas_call(
        _value_net_kernel,
        out_shape=jax.ShapeDtypeStruct((B, out_dim_p), out_dtype),
        grid_spec=pltpu.PrefetchScalarGridSpec(
            num_scalar_prefetch=0,
            grid=(num_blocks,),
            in_specs=[
                pl.BlockSpec((block_b, in_dim), lambda i: (i, 0), **x_spec_kwargs),  # x tile
                pl.BlockSpec((in_dim, h1), lambda i: (0, 0)),        # w1 (resident)
                pl.BlockSpec((1, h1), lambda i: (0, 0)),             # b1
                pl.BlockSpec((h1, h2), lambda i: (0, 0)),            # w2
                pl.BlockSpec((1, h2), lambda i: (0, 0)),             # b2
                pl.BlockSpec((h2, out_dim_p), lambda i: (0, 0)),     # w3 (lane-padded)
                pl.BlockSpec((1, out_dim_p), lambda i: (0, 0)),      # b3 (lane-padded)
            ],
            out_specs=pl.BlockSpec((block_b, out_dim_p), lambda i: (i, 0)),
        ),
        compiler_params=pltpu.CompilerParams(
            dimension_semantics=("parallel",),
            vmem_limit_bytes=vmem_limit,
        ),
    )(state_c, w1c, b1f, w2c, b2f, w3c, b3f)

    # Slice off the lane padding of the final layer.
    return out[:, :out_dim]


def init_value_network_params(key, input_dim, output_dim, dtype=jnp.float32):
    """Deterministic init matching torch.nn.Linear default (U[-1/sqrt(fan_in), 1/sqrt(fan_in)])."""
    dims = [(input_dim, 256), (256, 128), (128, output_dim)]
    params = {}
    for idx, (fan_in, fan_out) in enumerate(dims, start=1):
        key, kw, kb = jax.random.split(key, 3)
        bound = 1.0 / (fan_in ** 0.5)
        params[f"w{idx}"] = jax.random.uniform(
            kw, (fan_in, fan_out), dtype=dtype, minval=-bound, maxval=bound)
        params[f"b{idx}"] = jax.random.uniform(
            kb, (1, fan_out), dtype=dtype, minval=-bound, maxval=bound)
    return params


def _reference_forward(state, params):
    h = jnp.maximum(state @ params["w1"] + params["b1"], 0.0)
    h = jnp.maximum(h @ params["w2"] + params["b2"], 0.0)
    return h @ params["w3"] + params["b3"]


if __name__ == "__main__":
    input_dim, output_dim = 32, 1

    key = jax.random.PRNGKey(0)
    key, pkey, xkey1, xkey2 = jax.random.split(key, 4)
    params = init_value_network_params(pkey, input_dim, output_dim)

    # Small batch (single grid step, block == full batch).
    state_small = jax.random.normal(xkey1, (8, input_dim), dtype=jnp.float32)
    out_small = jax.block_until_ready(value_network_forward(state_small, params))
    ref_small = _reference_forward(state_small, params)
    assert out_small.shape == (8, output_dim), out_small.shape
    assert jnp.allclose(out_small, ref_small, atol=1e-5, rtol=1e-5), "mismatch (small batch)"

    # Ragged batch: 2 grid steps, last block partial (no host-side padding), exercising
    # the lane-dense padded-output path.
    state_big = jax.random.normal(xkey2, (100, input_dim), dtype=jnp.float32)
    out_big = jax.block_until_ready(value_network_forward(state_big, params))
    ref_big = _reference_forward(state_big, params)
    assert out_big.shape == (100, output_dim), out_big.shape
    assert jnp.allclose(out_big, ref_big, atol=1e-5, rtol=1e-5), "mismatch (ragged batch)"

    # bf16 compute path (v6e/v7x fast path): bf16 operands, f32 accumulation.
    out_bf16 = jax.block_until_ready(
        value_network_forward(state_small, params, compute_dtype=jnp.bfloat16))
    assert jnp.allclose(out_bf16, ref_small, atol=5e-2, rtol=5e-2), "mismatch (bf16 path)"

    print("KERNEL_OK")
</pallas_src>

<mosaic_0001>
module attributes {stable_mosaic.version = 11 : i64} {
  func.func @_value_net_kernel(%arg0: i32, %arg1: memref<8x32xf32, #tpu.memory_space<vmem>>, %arg2: memref<32x256xf32, #tpu.memory_space<vmem>>, %arg3: memref<1x256xf32, #tpu.memory_space<vmem>>, %arg4: memref<256x128xf32, #tpu.memory_space<vmem>>, %arg5: memref<1x128xf32, #tpu.memory_space<vmem>>, %arg6: memref<128x128xf32, #tpu.memory_space<vmem>>, %arg7: memref<1x128xf32, #tpu.memory_space<vmem>>, %arg8: memref<8x128xf32, #tpu.memory_space<vmem>>) attributes {dimension_semantics = [#tpu.dimension_semantics<parallel>], iteration_bounds = array<i64: 1>, scalar_prefetch = 0 : i64, scratch_operands = 0 : i64, tpu.core_type = #tpu.core_type<tc>, window_params = [{transform_indices = @transform_0, window_bounds = array<i64: 8, 32>}, {pipeline_mode = #tpu.pipeline_mode<synchronous>, transform_indices = @transform_1, window_bounds = array<i64: 32, 256>}, {pipeline_mode = #tpu.pipeline_mode<synchronous>, transform_indices = @transform_2, window_bounds = array<i64: 1, 256>}, {pipeline_mode = #tpu.pipeline_mode<synchronous>, transform_indices = @transform_3, window_bounds = array<i64: 256, 128>}, {pipeline_mode = #tpu.pipeline_mode<synchronous>, transform_indices = @transform_4, window_bounds = array<i64: 1, 128>}, {pipeline_mode = #tpu.pipeline_mode<synchronous>, transform_indices = @transform_5, window_bounds = array<i64: 128, 128>}, {pipeline_mode = #tpu.pipeline_mode<synchronous>, transform_indices = @transform_6, window_bounds = array<i64: 1, 128>}, {transform_indices = @transform_7, window_bounds = array<i64: 8, 128>}]} {
    %c0 = arith.constant 0 : index
    %c0_0 = arith.constant 0 : index
    %0 = vector.load %arg1[%c0, %c0_0] : memref<8x32xf32, #tpu.memory_space<vmem>>, vector<8x32xf32>
    %c0_1 = arith.constant 0 : index
    %c0_2 = arith.constant 0 : index
    %1 = vector.load %arg2[%c0_1, %c0_2] : memref<32x256xf32, #tpu.memory_space<vmem>>, vector<32x256xf32>
    %cst = arith.constant dense<0.000000e+00> : vector<8x256xf32>
    %2 = tpu.matmul %0, %1, %cst {dimension_numbers = #tpu.dot_dimension_numbers<[1], [0], [0], [1], [0, 0, 1, 1], [], []>} : vector<8x32xf32>, vector<32x256xf32>, vector<8x256xf32> -> vector<8x256xf32>
    %c0_3 = arith.constant 0 : index
    %c0_4 = arith.constant 0 : index
    %3 = vector.load %arg3[%c0_3, %c0_4] : memref<1x256xf32, #tpu.memory_space<vmem>>, vector<1x256xf32>
    %4 = vector.broadcast %3 : vector<1x256xf32> to vector<8x256xf32>
    %5 = arith.addf %2, %4 : vector<8x256xf32>
    %cst_5 = arith.constant 0.000000e+00 : f32
    %6 = vector.broadcast %cst_5 : f32 to vector<8x256xf32>
    %7 = arith.maximumf %5, %6 : vector<8x256xf32>
    %c0_6 = arith.constant 0 : index
    %c0_7 = arith.constant 0 : index
    %8 = vector.load %arg4[%c0_6, %c0_7] : memref<256x128xf32, #tpu.memory_space<vmem>>, vector<256x128xf32>
    %cst_8 = arith.constant dense<0.000000e+00> : vector<8x128xf32>
    %9 = tpu.matmul %7, %8, %cst_8 {dimension_numbers = #tpu.dot_dimension_numbers<[1], [0], [0], [1], [0, 0, 1, 1], [], []>} : vector<8x256xf32>, vector<256x128xf32>, vector<8x128xf32> -> vector<8x128xf32>
    %c0_9 = arith.constant 0 : index
    %c0_10 = arith.constant 0 : index
    %10 = vector.load %arg5[%c0_9, %c0_10] : memref<1x128xf32, #tpu.memory_space<vmem>>, vector<1x128xf32>
    %11 = vector.broadcast %10 : vector<1x128xf32> to vector<8x128xf32>
    %12 = arith.addf %9, %11 : vector<8x128xf32>
    %cst_11 = arith.constant 0.000000e+00 : f32
    %13 = vector.broadcast %cst_11 : f32 to vector<8x128xf32>
    %14 = arith.maximumf %12, %13 : vector<8x128xf32>
    %c0_12 = arith.constant 0 : index
    %c0_13 = arith.constant 0 : index
    %15 = vector.load %arg6[%c0_12, %c0_13] : memref<128x128xf32, #tpu.memory_space<vmem>>, vector<128x128xf32>
    %cst_14 = arith.constant dense<0.000000e+00> : vector<8x128xf32>
    %16 = tpu.matmul %14, %15, %cst_14 {dimension_numbers = #tpu.dot_dimension_numbers<[1], [0], [0], [1], [0, 0, 1, 1], [], []>} : vector<8x128xf32>, vector<128x128xf32>, vector<8x128xf32> -> vector<8x128xf32>
    %c0_15 = arith.constant 0 : index
    %c0_16 = arith.constant 0 : index
    %17 = vector.load %arg7[%c0_15, %c0_16] : memref<1x128xf32, #tpu.memory_space<vmem>>, vector<1x128xf32>
    %18 = vector.broadcast %17 : vector<1x128xf32> to vector<8x128xf32>
    %19 = arith.addf %16, %18 : vector<8x128xf32>
    %c0_17 = arith.constant 0 : index
    %c0_18 = arith.constant 0 : index
    %20 = vector.load %arg8[%c0_17, %c0_18] : memref<8x128xf32, #tpu.memory_space<vmem>>, vector<8x128xf32>
    tpu.vector_store %arg8[%c0_17, %c0_18], %19 {strides = array<i32>} : memref<8x128xf32, #tpu.memory_space<vmem>>, vector<8x128xf32>,
    return
  }
  func.func @transform_0(%arg0: i32) -> (i32, i32) {
    %c0_i32 = arith.constant 0 : i32
    %c0_i32_0 = arith.constant 0 : i32
    return %arg0, %c0_i32 : i32, i32
  }
  func.func @transform_1(%arg0: i32) -> (i32, i32) {
    %c0_i32 = arith.constant 0 : i32
    %c0_i32_0 = arith.constant 0 : i32
    %c0_i32_1 = arith.constant 0 : i32
    return %c0_i32, %c0_i32_0 : i32, i32
  }
  func.func @transform_2(%arg0: i32) -> (i32, i32) {
    %c0_i32 = arith.constant 0 : i32
    %c0_i32_0 = arith.constant 0 : i32
    %c0_i32_1 = arith.constant 0 : i32
    return %c0_i32, %c0_i32_0 : i32, i32
  }
  func.func @transform_3(%arg0: i32) -> (i32, i32) {
    %c0_i32 = arith.constant 0 : i32
    %c0_i32_0 = arith.constant 0 : i32
    %c0_i32_1 = arith.constant 0 : i32
    return %c0_i32, %c0_i32_0 : i32, i32
  }
  func.func @transform_4(%arg0: i32) -> (i32, i32) {
    %c0_i32 = arith.constant 0 : i32
    %c0_i32_0 = arith.constant 0 : i32
    %c0_i32_1 = arith.constant 0 : i32
    return %c0_i32, %c0_i32_0 : i32, i32
  }
  func.func @transform_5(%arg0: i32) -> (i32, i32) {
    %c0_i32 = arith.constant 0 : i32
    %c0_i32_0 = arith.constant 0 : i32
    %c0_i32_1 = arith.constant 0 : i32
    return %c0_i32, %c0_i32_0 : i32, i32
  }
  func.func @transform_6(%arg0: i32) -> (i32, i32) {
    %c0_i32 = arith.constant 0 : i32
    %c0_i32_0 = arith.constant 0 : i32
    %c0_i32_1 = arith.constant 0 : i32
    return %c0_i32, %c0_i32_0 : i32, i32
  }
  func.func @transform_7(%arg0: i32) -> (i32, i32) {
    %c0_i32 = arith.constant 0 : i32
    %c0_i32_0 = arith.constant 0 : i32
    return %arg0, %c0_i32 : i32, i32
  }
}

</mosaic_0001>

<llo_original>
// kernel: value_network_forward.1
$region0: #{value_network_forward.1}
  #allocation0 [shape = 'u32[]', space=smem, size = 0x4, offset = 0x4, fixed_abs, tag = 'smem constant byte address 0x4 - core index']
  #allocation1 [shape = 'u32[144,128]{1,0:T(1,128)}', space=vmem, size = 0x12000, scoped, tag = 'internal scratch']
  %s0 = inlined_call_operand.vmem [shape: f32[8,32], index: 0, kind: input, shape index: {}]
  %s1 = inlined_call_operand.vmem [shape: f32[32,256], index: 1, kind: input, shape index: {}]
  %s2 = inlined_call_operand.vmem [shape: f32[1,256], index: 2, kind: input, shape index: {}]
  %s3 = inlined_call_operand.vmem [shape: f32[256,128], index: 3, kind: input, shape index: {}]
  %s4 = inlined_call_operand.vmem [shape: f32[1,128], index: 4, kind: input, shape index: {}]
  %s5 = inlined_call_operand.vmem [shape: f32[128,128], index: 5, kind: input, shape index: {}]
  %s6 = inlined_call_operand.vmem [shape: f32[1,128], index: 6, kind: input, shape index: {}]
  %s7 = inlined_call_operand.vmem [shape: f32[8,128], index: 7, kind: output, shape index: {}]
  %s8 = sld [smem:[#allocation0]]
  $region38: #{value_network_forward.1} parent=0
    _
  %s10 = ssub.s32 1, %s8
  %s11 = scalar_select 0, %s10, %s8
  // Predicated region
  $region2: #{value_network_forward.1} parent=0 // pred_check
    _
  $region3: #{value_network_forward.1} parent=0 // pred_check_branch
    %13 = sbr.rel (0) target = $region5
  $region4: #{value_network_forward.1} parent=0 // pred_region
    _
  $region5: #{value_network_forward.1} parent=0 // pred_fallthru
    _
  // Predicated region
  $region6: #{value_network_forward.1} parent=0 // pred_check
    _
  $region7: #{value_network_forward.1} parent=0 // pred_check_branch
    %15 = sbr.rel (0) target = $region9
  $region8: #{value_network_forward.1} parent=0 // pred_region
    _
  $region9: #{value_network_forward.1} parent=0 // pred_fallthru
    _
  // Predicated region
  $region10: #{value_network_forward.1} parent=0 // pred_check
    _
  $region11: #{value_network_forward.1} parent=0 // pred_check_branch
    %17 = sbr.rel (0) target = $region13
  $region12: #{value_network_forward.1} parent=0 // pred_region
    _
  $region13: #{value_network_forward.1} parent=0 // pred_fallthru
    _
  // Predicated region
  $region14: #{value_network_forward.1} parent=0 // pred_check
    _
  $region15: #{value_network_forward.1} parent=0 // pred_check_branch
    %19 = sbr.rel (0) target = $region17
  $region16: #{value_network_forward.1} parent=0 // pred_region
    _
  $region17: #{value_network_forward.1} parent=0 // pred_fallthru
    _
  // Predicated region
  $region18: #{value_network_forward.1} parent=0 // pred_check
    _
  $region19: #{value_network_forward.1} parent=0 // pred_check_branch
    %21 = sbr.rel (0) target = $region21
  $region20: #{value_network_forward.1} parent=0 // pred_region
    _
  $region21: #{value_network_forward.1} parent=0 // pred_fallthru
    _
  // Predicated region
  $region22: #{value_network_forward.1} parent=0 // pred_check
    _
  $region23: #{value_network_forward.1} parent=0 // pred_check_branch
    %23 = sbr.rel (0) target = $region25
  $region24: #{value_network_forward.1} parent=0 // pred_region
    _
  $region25: #{value_network_forward.1} parent=0 // pred_fallthru
    _
  // Predicated region
  $region26: #{value_network_forward.1} parent=0 // pred_check
    _
  $region27: #{value_network_forward.1} parent=0 // pred_check_branch
    %25 = sbr.rel (0) target = $region29
  $region28: #{value_network_forward.1} parent=0 // pred_region
    _
  $region29: #{value_network_forward.1} parent=0 // pred_fallthru
    _
  %v26 = vld [vmem:[%s0] sm:$0xff]
  %v27 = vld [vmem:[%s1] sm:$0xff]
  %v28 = vld [vmem:[%s1 + $0x8] sm:$0xff]
  %v29 = vld [vmem:[%s1 + $0x10] sm:$0xff]
  %v30 = vld [vmem:[%s1 + $0x18] sm:$0xff]
  %v31 = vld [vmem:[%s1 + $0x20] sm:$0xff]
  %v32 = vld [vmem:[%s1 + $0x28] sm:$0xff]
  %v33 = vld [vmem:[%s1 + $0x30] sm:$0xff]
  %v34 = vld [vmem:[%s1 + $0x38] sm:$0xff]
  %v35 = vld [vmem:[%s2] sm:$0x3]
  %v37 = vlaneseq
  %v38 = vshrl.u32 %v37, 7
  %v39 = vsub.s32 0, %v38
  %v40 = vrot.slane %v35, %v39
  %v41 = vlaneseq
  %v42 = vshrl.u32 %v41, 7
  %v43 = vsub.s32 1, %v42
  %v44 = vrot.slane %v35, %v43
  %vm47 = vcmask 261120
  %v49 = vsel %vm47, %v26, 0
  %51 = vmatprep.subr.mxu0 %v28
  %52 = vmatpush1.msra.mxu0 %v27
  %53 = vmatprep.subr.mxu0 %v30
  %54 = vmatpush1.msra.mxu0 %v29
  %55 = vmatprep.subr.mxu0 %v32
  %56 = vmatpush1.msra.mxu0 %v31
  %57 = vmatprep.subr.mxu0 %v34
  %58 = vmatpush1.msra.mxu0 %v33
  %59 = vmatprep.subr.mxu0 0.0
  %60 = vmatpush1.msra.mxu0 0.0
  %61 = vmatprep.subr.mxu0 0.0
  %62 = vmatpush1.msra.mxu0 0.0
  %63 = vmatprep.subr.mxu0 0.0
  %64 = vmatpush1.msra.mxu0 0.0
  %65 = vmatprep.subr.mxu0 0.0
  %66 = vmatpush1.msra.mxu0 0.0
  %67 = vmatprep.subr.mxu0 0.0
  %68 = vmatpush1.msra.mxu0 0.0
  %69 = vmatprep.subr.mxu0 0.0
  %70 = vmatpush1.msra.mxu0 0.0
  %71 = vmatprep.subr.mxu0 0.0
  %72 = vmatpush1.msra.mxu0 0.0
  %73 = vmatprep.subr.mxu0 0.0
  %74 = vmatpush1.msra.mxu0 0.0
  %75 = vmatprep.subr.mxu0 0.0
  %76 = vmatpush1.msra.mxu0 0.0
  %77 = vmatprep.subr.mxu0 0.0
  %78 = vmatpush1.msra.mxu0 0.0
  %79 = vmatprep.subr.mxu0 0.0
  %80 = vmatpush1.msra.mxu0 0.0
  %81 = vmatprep.subr.mxu0 0.0
  %82 = vmatpush1.msra.mxu0 0.0
  %83 = vmatprep.subr.mxu0 0.0
  %84 = vmatpush1.msra.mxu0 0.0
  %85 = vmatprep.subr.mxu0 0.0
  %86 = vmatpush1.msra.mxu0 0.0
  %87 = vmatprep.subr.mxu0 0.0
  %88 = vmatpush1.msra.mxu0 0.0
  %89 = vmatprep.subr.mxu0 0.0
  %90 = vmatpush1.msra.mxu0 0.0
  %91 = vmatprep.subr.mxu0 0.0
  %92 = vmatpush1.msra.mxu0 0.0
  %93 = vmatprep.subr.mxu0 0.0
  %94 = vmatpush1.msra.mxu0 0.0
  %95 = vmatprep.subr.mxu0 0.0
  %96 = vmatpush1.msra.mxu0 0.0
  %97 = vmatprep.subr.mxu0 0.0
  %98 = vmatpush1.msra.mxu0 0.0
  %99 = vmatprep.subr.mxu0 0.0
  %100 = vmatpush1.msra.mxu0 0.0
  %101 = vmatprep.subr.mxu0 0.0
  %102 = vmatpush1.msra.mxu0 0.0
  %103 = vmatprep.subr.mxu0 0.0
  %104 = vmatpush1.msra.mxu0 0.0
  %105 = vmatprep.subr.mxu0 0.0
  %106 = vmatpush1.msra.mxu0 0.0
  %107 = vmatprep.subr.mxu0 0.0
  %108 = vmatpush1.msra.mxu0 0.0
  %109 = vmatprep.subr.mxu0 0.0
  %110 = vmatpush1.msra.mxu0 0.0
  %111 = vmatprep.subr.mxu0 0.0
  %112 = vmatpush1.msra.mxu0 0.0
  %113 = vmatprep.subr.mxu0 0.0
  %114 = vmatpush1.msra.mxu0 0.0
  %115 = vmatprep.mubr.f32.mxu0 0.0
  %116 = vmatmul.mubr.f32.gmra.mrb[0].mxu0 %v49
  %v117 = vpop.f32.mrb[0].mxu0
  %v118 = vadd.f32 %v40, %v117
  %v119 = vpop.f32.mrb[0].mxu0
  %v120 = vadd.f32 %v44, %v119
  %121 = vdwg.mxu0
  %v122 = vmax.f32 %v118, 0.0
  %v123 = vmax.f32 %v120, 0.0
  %v124 = vld [vmem:[%s3] sm:$0xff]
  %v125 = vld [vmem:[%s3 + $0x8] sm:$0xff]
  %v126 = vld [vmem:[%s3 + $0x10] sm:$0xff]
  %v127 = vld [vmem:[%s3 + $0x18] sm:$0xff]
  %v128 = vld [vmem:[%s3 + $0x20] sm:$0xff]
  %v129 = vld [vmem:[%s3 + $0x28] sm:$0xff]
  %v130 = vld [vmem:[%s3 + $0x30] sm:$0xff]
  %v131 = vld [vmem:[%s3 + $0x38] sm:$0xff]
  %v132 = vld [vmem:[%s3 + $0x40] sm:$0xff]
  %v133 = vld [vmem:[%s3 + $0x48] sm:$0xff]
  %v134 = vld [vmem:[%s3 + $0x50] sm:$0xff]
  %v135 = vld [vmem:[%s3 + $0x58] sm:$0xff]
  %v136 = vld [vmem:[%s3 + $0x60] sm:$0xff]
  %v137 = vld [vmem:[%s3 + $0x68] sm:$0xff]
  %v138 = vld [vmem:[%s3 + $0x70] sm:$0xff]
  %v139 = vld [vmem:[%s3 + $0x78] sm:$0xff]
  %v140 = vld [vmem:[%s3 + $0x80] sm:$0xff]
  %v141 = vld [vmem:[%s3 + $0x88] sm:$0xff]
  %v142 = vld [vmem:[%s3 + $0x90] sm:$0xff]
  %v143 = vld [vmem:[%s3 + $0x98] sm:$0xff]
  %v144 = vld [vmem:[%s3 + $0xa0] sm:$0xff]
  %v145 = vld [vmem:[%s3 + $0xa8] sm:$0xff]
  %v146 = vld [vmem:[%s3 + $0xb0] sm:$0xff]
  %v147 = vld [vmem:[%s3 + $0xb8] sm:$0xff]
  %v148 = vld [vmem:[%s3 + $0xc0] sm:$0xff]
  %v149 = vld [vmem:[%s3 + $0xc8] sm:$0xff]
  %v150 = vld [vmem:[%s3 + $0xd0] sm:$0xff]
  %v151 = vld [vmem:[%s3 + $0xd8] sm:$0xff]
  %v152 = vld [vmem:[%s3 + $0xe0] sm:$0xff]
  %v153 = vld [vmem:[%s3 + $0xe8] sm:$0xff]
  %v154 = vld [vmem:[%s3 + $0xf0] sm:$0xff]
  %v155 = vld [vmem:[%s3 + $0xf8] sm:$0xff]
  %v156 = vld [vmem:[%s4] sm:$0x1]
  %v158 = vlaneseq
  %v159 = vshrl.u32 %v158, 7
  %v160 = vsub.s32 0, %v159
  %v161 = vrot.slane %v156, %v160
  %163 = vmatprep.subr.mxu0 0.0
  %164 = vmatpush1.msra.mxu0 %v124
  %165 = vmatprep.subr.mxu0 0.0
  %166 = vmatpush1.msra.mxu0 %v125
  %167 = vmatprep.subr.mxu0 0.0
  %168 = vmatpush1.msra.mxu0 %v126
  %169 = vmatprep.subr.mxu0 0.0
  %170 = vmatpush1.msra.mxu0 %v127
  %171 = vmatprep.subr.mxu0 0.0
  %172 = vmatpush1.msra.mxu0 %v128
  %173 = vmatprep.subr.mxu0 0.0
  %174 = vmatpush1.msra.mxu0 %v129
  %175 = vmatprep.subr.mxu0 0.0
  %176 = vmatpush1.msra.mxu0 %v130
  %177 = vmatprep.subr.mxu0 0.0
  %178 = vmatpush1.msra.mxu0 %v131
  %179 = vmatprep.subr.mxu0 0.0
  %180 = vmatpush1.msra.mxu0 %v132
  %181 = vmatprep.subr.mxu0 0.0
  %182 = vmatpush1.msra.mxu0 %v133
  %183 = vmatprep.subr.mxu0 0.0
  %184 = vmatpush1.msra.mxu0 %v134
  %185 = vmatprep.subr.mxu0 0.0
  %186 = vmatpush1.msra.mxu0 %v135
  %187 = vmatprep.subr.mxu0 0.0
  %188 = vmatpush1.msra.mxu0 %v136
  %189 = vmatprep.subr.mxu0 0.0
  %190 = vmatpush1.msra.mxu0 %v137
  %191 = vmatprep.subr.mxu0 0.0
  %192 = vmatpush1.msra.mxu0 %v138
  %193 = vmatprep.subr.mxu0 0.0
  %194 = vmatpush1.msra.mxu0 %v139
  %195 = vmatprep.subr.mxu0 0.0
  %196 = vmatpush1.msra.mxu0 %v140
  %197 = vmatprep.subr.mxu0 0.0
  %198 = vmatpush1.msra.mxu0 %v141
  %199 = vmatprep.subr.mxu0 0.0
  %200 = vmatpush1.msra.mxu0 %v142
  %201 = vmatprep.subr.mxu0 0.0
  %202 = vmatpush1.msra.mxu0 %v143
  %203 = vmatprep.subr.mxu0 0.0
  %204 = vmatpush1.msra.mxu0 %v144
  %205 = vmatprep.subr.mxu0 0.0
  %206 = vmatpush1.msra.mxu0 %v145
  %207 = vmatprep.subr.mxu0 0.0
  %208 = vmatpush1.msra.mxu0 %v146
  %209 = vmatprep.subr.mxu0 0.0
  %210 = vmatpush1.msra.mxu0 %v147
  %211 = vmatprep.subr.mxu0 0.0
  %212 = vmatpush1.msra.mxu0 %v148
  %213 = vmatprep.subr.mxu0 0.0
  %214 = vmatpush1.msra.mxu0 %v149
  %215 = vmatprep.subr.mxu0 0.0
  %216 = vmatpush1.msra.mxu0 %v150
  %217 = vmatprep.subr.mxu0 0.0
  %218 = vmatpush1.msra.mxu0 %v151
  %219 = vmatprep.subr.mxu0 0.0
  %220 = vmatpush1.msra.mxu0 %v152
  %221 = vmatprep.subr.mxu0 0.0
  %222 = vmatpush1.msra.mxu0 %v153
  %223 = vmatprep.subr.mxu0 0.0
  %224 = vmatpush1.msra.mxu0 %v154
  %225 = vmatprep.subr.mxu0 0.0
  %226 = vmatpush1.msra.mxu0 %v155
  %227 = vmatprep.mubr.f32.mxu0 %v123
  %228 = vmatmul.mubr.f32.gmra.mrb[0].mxu0 %v122
  %v229 = vpop.f32.mrb[0].mxu0
  %v230 = vadd.f32 %v161, %v229
  %v231 = vpop.f32.mrb[0].mxu0
  %232 = vdwg.mxu0
  %v233 = vmax.f32 %v230, 0.0
  %v234 = vld [vmem:[%s5] sm:$0xff]
  %v235 = vld [vmem:[%s5 + $0x8] sm:$0xff]
  %v236 = vld [vmem:[%s5 + $0x10] sm:$0xff]
  %v237 = vld [vmem:[%s5 + $0x18] sm:$0xff]
  %v238 = vld [vmem:[%s5 + $0x20] sm:$0xff]
  %v239 = vld [vmem:[%s5 + $0x28] sm:$0xff]
  %v240 = vld [vmem:[%s5 + $0x30] sm:$0xff]
  %v241 = vld [vmem:[%s5 + $0x38] sm:$0xff]
  %v242 = vld [vmem:[%s5 + $0x40] sm:$0xff]
  %v243 = vld [vmem:[%s5 + $0x48] sm:$0xff]
  %v244 = vld [vmem:[%s5 + $0x50] sm:$0xff]
  %v245 = vld [vmem:[%s5 + $0x58] sm:$0xff]
  %v246 = vld [vmem:[%s5 + $0x60] sm:$0xff]
  %v247 = vld [vmem:[%s5 + $0x68] sm:$0xff]
  %v248 = vld [vmem:[%s5 + $0x70] sm:$0xff]
  %v249 = vld [vmem:[%s5 + $0x78] sm:$0xff]
  %v250 = vld [vmem:[%s6] sm:$0x1]
  %v252 = vlaneseq
  %v253 = vshrl.u32 %v252, 7
  %v254 = vsub.s32 0, %v253
  %v255 = vrot.slane %v250, %v254
  %257 = vmatprep.subr.mxu0 0.0
  %258 = vmatpush1.msra.mxu0 %v234
  %259 = vmatprep.subr.mxu0 0.0
  %260 = vmatpush1.msra.mxu0 %v235
  %261 = vmatprep.subr.mxu0 0.0
  %262 = vmatpush1.msra.mxu0 %v236
  %263 = vmatprep.subr.mxu0 0.0
  %264 = vmatpush1.msra.mxu0 %v237
  %265 = vmatprep.subr.mxu0 0.0
  %266 = vmatpush1.msra.mxu0 %v238
  %267 = vmatprep.subr.mxu0 0.0
  %268 = vmatpush1.msra.mxu0 %v239
  %269 = vmatprep.subr.mxu0 0.0
  %270 = vmatpush1.msra.mxu0 %v240
  %271 = vmatprep.subr.mxu0 0.0
  %272 = vmatpush1.msra.mxu0 %v241
  %273 = vmatprep.subr.mxu0 0.0
  %274 = vmatpush1.msra.mxu0 %v242
  %275 = vmatprep.subr.mxu0 0.0
  %276 = vmatpush1.msra.mxu0 %v243
  %277 = vmatprep.subr.mxu0 0.0
  %278 = vmatpush1.msra.mxu0 %v244
  %279 = vmatprep.subr.mxu0 0.0
  %280 = vmatpush1.msra.mxu0 %v245
  %281 = vmatprep.subr.mxu0 0.0
  %282 = vmatpush1.msra.mxu0 %v246
  %283 = vmatprep.subr.mxu0 0.0
  %284 = vmatpush1.msra.mxu0 %v247
  %285 = vmatprep.subr.mxu0 0.0
  %286 = vmatpush1.msra.mxu0 %v248
  %287 = vmatprep.subr.mxu0 0.0
  %288 = vmatpush1.msra.mxu0 %v249
  %289 = vmatprep.subr.mxu0 0.0
  %290 = vmatpush1.msra.mxu0 0.0
  %291 = vmatprep.subr.mxu0 0.0
  %292 = vmatpush1.msra.mxu0 0.0
  %293 = vmatprep.subr.mxu0 0.0
  %294 = vmatpush1.msra.mxu0 0.0
  %295 = vmatprep.subr.mxu0 0.0
  %296 = vmatpush1.msra.mxu0 0.0
  %297 = vmatprep.subr.mxu0 0.0
  %298 = vmatpush1.msra.mxu0 0.0
  %299 = vmatprep.subr.mxu0 0.0
  %300 = vmatpush1.msra.mxu0 0.0
  %301 = vmatprep.subr.mxu0 0.0
  %302 = vmatpush1.msra.mxu0 0.0
  %303 = vmatprep.subr.mxu0 0.0
  %304 = vmatpush1.msra.mxu0 0.0
  %305 = vmatprep.subr.mxu0 0.0
  %306 = vmatpush1.msra.mxu0 0.0
  %307 = vmatprep.subr.mxu0 0.0
  %308 = vmatpush1.msra.mxu0 0.0
  %309 = vmatprep.subr.mxu0 0.0
  %310 = vmatpush1.msra.mxu0 0.0
  %311 = vmatprep.subr.mxu0 0.0
  %312 = vmatpush1.msra.mxu0 0.0
  %313 = vmatprep.subr.mxu0 0.0
  %314 = vmatpush1.msra.mxu0 0.0
  %315 = vmatprep.subr.mxu0 0.0
  %316 = vmatpush1.msra.mxu0 0.0
  %317 = vmatprep.subr.mxu0 0.0
  %318 = vmatpush1.msra.mxu0 0.0
  %319 = vmatprep.subr.mxu0 0.0
  %320 = vmatpush1.msra.mxu0 0.0
  %321 = vmatprep.mubr.f32.mxu0 0.0
  %322 = vmatmul.mubr.f32.gmra.mrb[0].mxu0 %v233
  %v323 = vpop.f32.mrb[0].mxu0
  %v324 = vadd.f32 %v255, %v323
  %v325 = vpop.f32.mrb[0].mxu0
  %326 = vdwg.mxu0
  %327 = vst [vmem:[%s7] sm:$0xff] %v324
  // Predicated region
  $region30: #{value_network_forward.1} parent=0 // pred_check
    _
  $region31: #{value_network_forward.1} parent=0 // pred_check_branch
    %329 = sbr.rel (0) target = $region33
  $region32: #{value_network_forward.1} parent=0 // pred_region
    _
  $region33: #{value_network_forward.1} parent=0 // pred_fallthru
    _
  // Predicated region
  $region34: #{value_network_forward.1} parent=0 // pred_check
    _
  $region35: #{value_network_forward.1} parent=0 // pred_check_branch
    %331 = sbr.rel (0) target = $region37
  $region36: #{value_network_forward.1} parent=0 // pred_region
    _
  $region37: #{value_network_forward.1} parent=0 // pred_fallthru
    _

</llo_original>
